<compile_context>
chip_gen: v6e
topology: v6e:2x2x1
jax: 0.10.0
libtpu: 0.0.40
codegen_flags: <defaults>
</compile_context>

<pallas_src>
import jax
import jax.numpy as jnp
from jax.experimental import pallas as pl
from jax.experimental.pallas import tpu as pltpu


def _copy_kernel(x_ref, o_ref):
    # Lane-dense (1, TS, 256) -> (1, TS, 256) copy; layouts match exactly.
    o_ref[...] = x_ref[...]


def _pick_tile(s):
    # Largest power-of-two tile (multiple of 8 sublanes) that divides S,
    # capped at 1024 rows so 2x(in+out) double-buffered tiles stay ~4 MiB.
    for ts in (1024, 512, 256, 128, 64, 32, 16, 8):
        if s % ts == 0:
            return ts
    return s  # fall back to a single full-S block


def view_as_heads(x165, x163, head_shape=(4, 64)):
    """Equivalent of x163.view(x165 + head_shape)."""
    target_shape = tuple(x165) + tuple(head_shape)   # e.g. (1, 384, 4, 64)
    b, s, h = x163.shape
    nh, hd = head_shape
    assert h == nh * hd, "last dim must equal prod(head_shape)"
    assert target_shape == (b, s, nh, hd), "view shape mismatch"

    ts = _pick_tile(s)
    grid = (b, s // ts)

    # Lane-dense copy: output keeps the (B, S, H) layout of the input.
    out3d = pl.pallas_call(
        _copy_kernel,
        out_shape=jax.ShapeDtypeStruct((b, s, h), x163.dtype),
        grid=grid,
        in_specs=[pl.BlockSpec((1, ts, h), lambda i, j: (i, j, 0))],
        out_specs=pl.BlockSpec((1, ts, h), lambda i, j: (i, j, 0)),
        compiler_params=pltpu.CompilerParams(
            dimension_semantics=("parallel", "parallel"),
            vmem_limit_bytes=32 * 1024 * 1024,
        ),
    )(x163)

    # Contiguous view: metadata-only reshape in XLA, done outside the kernel
    # so the kernel never touches a lane-sparse (4, 64) layout.
    return out3d.reshape(b, s, nh, hd)


if __name__ == "__main__":
    key = jax.random.PRNGKey(0)
    B, S, H = 1, 384, 256        # shapes implied by the module spec
    x163 = jax.random.normal(key, (B, S, H), dtype=jnp.float32)
    x165 = (B, S)

    x167 = view_as_heads(x165, x163, head_shape=(4, 64))
    jax.block_until_ready(x167)

    # correctness check against plain reshape (the reference semantics)
    ref = x163.reshape(B, S, 4, 64)
    assert x167.shape == (B, S, 4, 64)
    assert jnp.array_equal(x167, ref)

    print("KERNEL_OK")
</pallas_src>

<mosaic_0001>
module attributes {stable_mosaic.version = 11 : i64} {
  func.func @_copy_kernel(%arg0: i32, %arg1: i32, %arg2: memref<1x128x256xf32, #tpu.memory_space<vmem>>, %arg3: memref<1x128x256xf32, #tpu.memory_space<vmem>>) attributes {dimension_semantics = [#tpu.dimension_semantics<parallel>, #tpu.dimension_semantics<parallel>], iteration_bounds = array<i64: 1, 3>, scalar_prefetch = 0 : i64, scratch_operands = 0 : i64, tpu.core_type = #tpu.core_type<tc>, window_params = [{transform_indices = @transform_0, window_bounds = array<i64: 1, 128, 256>}, {transform_indices = @transform_1, window_bounds = array<i64: 1, 128, 256>}]} {
    %c0 = arith.constant 0 : index
    %c0_0 = arith.constant 0 : index
    %c0_1 = arith.constant 0 : index
    %0 = vector.load %arg2[%c0, %c0_0, %c0_1] : memref<1x128x256xf32, #tpu.memory_space<vmem>>, vector<1x128x256xf32>
    %c0_2 = arith.constant 0 : index
    %c0_3 = arith.constant 0 : index
    %c0_4 = arith.constant 0 : index
    %1 = vector.load %arg3[%c0_2, %c0_3, %c0_4] : memref<1x128x256xf32, #tpu.memory_space<vmem>>, vector<1x128x256xf32>
    tpu.vector_store %arg3[%c0_2, %c0_3, %c0_4], %0 {strides = array<i32>} : memref<1x128x256xf32, #tpu.memory_space<vmem>>, vector<1x128x256xf32>,
    return
  }
  func.func @transform_0(%arg0: i32, %arg1: i32) -> (i32, i32, i32) {
    %c0_i32 = arith.constant 0 : i32
    %c0_i32_0 = arith.constant 0 : i32
    return %arg0, %arg1, %c0_i32 : i32, i32, i32
  }
  func.func @transform_1(%arg0: i32, %arg1: i32) -> (i32, i32, i32) {
    %c0_i32 = arith.constant 0 : i32
    %c0_i32_0 = arith.constant 0 : i32
    return %arg0, %arg1, %c0_i32 : i32, i32, i32
  }
}

</mosaic_0001>

<llo_original>
// kernel: tpu_custom_call.1
$region0: #{tpu_custom_call.1}
  #allocation0 [shape = 'u32[]', space=smem, size = 0x4, offset = 0x4, fixed_abs, tag = 'smem constant byte address 0x4 - core index']
  #allocation1 [shape = 'u32[144,128]{1,0:T(1,128)}', space=vmem, size = 0x12000, scoped, tag = 'internal scratch']
  %s0 = inlined_call_operand.hbm [shape: f32[1,384,256], index: 0, kind: input, shape index: {}]
  %s1 = inlined_call_operand.hbm [shape: f32[1,384,256], index: 1, kind: output, shape index: {}]
  %s2 = sld [smem:[#allocation0]]
  $region41: #{tpu_custom_call.1} parent=0
    _
  %s4 = ssub.s32 1, %s2
  %s5 = scalar_select 0, %s4, %s2
  $region1: #{tpu_custom_call.1} parent=0
    #allocation2 [shape = 'u8[262144]{0}', space=vmem, size = 0x40000, scoped, tag = 'input window, operand 0']
    #allocation3 [shape = 's32[2]{0}', space=sflag, size = 0x8, scoped, tag = 'scoped memory for tpu_custom_call.1']
    #allocation4 [shape = 's32[2]{0}', space=sflag, size = 0x8, scoped, tag = 'scoped memory for tpu_custom_call.1']
    #allocation5 [shape = 'u8[262144]{0}', space=vmem, size = 0x40000, scoped, tag = 'output window, operand 0']
    %6 = vsyncpa [#allocation3], 0
    %s7 = scalar_lea.sflag [#allocation3], 1
    %8 = vsyncpa %s7, 0
    %9 = vsyncpa [#allocation4], 0
    %s10 = scalar_lea.sflag [#allocation4], 1
    %11 = vsyncpa %s10, 0
    loop: start=0, step=1, limit=5
    $region2: #{tpu_custom_call.1} parent=1 // loop_pre_header
      _
    $region3: #{tpu_custom_call.1} parent=1 // loop_header
      %s13 = sphi 0, %s17
      %p14 = scmp.ge.s32.totalorder %s13, 5
      %s20 = sphi 0, %s32
      %s21 = sphi 0, %s28
      %s22 = sphi 0, %s20
      %s23 = sphi 0, %s21
      %s24 = sphi 0, %s22
      %s25 = sphi 0, %s23
      %s37 = sphi 0, %s39
      %s40 = sphi 0, %s37
      %s41 = sphi 0, %s40
      %s57 = sphi 0, %s41
      %s65 = sphi 0, %s67
      %s68 = sphi 0, %s65
      %s69 = sphi 0, %s68
      %s85 = sphi 0, %s69
    $region4: #{tpu_custom_call.1} parent=1 // loop_header_branch
      %16 = sbr.rel (%p14) target = $region8
    $region5: #{tpu_custom_call.1} parent=1 // loop_body
      %s18 = ssub.s32 %s13, 1
      %s19 = ssub.s32 %s13, 2
      %s26 = sadd.s32 1, %s21
      %p27 = scmp.ge.s32.totalorder %s26, 3
      %s28 = scalar_select %p27, 0, %s26
      %s29 = sadd.s32 1, %s20
      %s30 = scalar_select %p27, %s29, %s20
      %p31 = scmp.ge.s32.totalorder %s30, 1
      %s32 = scalar_select %p31, 0, %s30
      %s33 = ssub.s32 %s20, %s32
      %s34 = ssub.s32 %s21, %s28
      %s35 = sor.u32 %s33, %s34
      %p36 = scmp.eq.s32.totalorder %s35, 0
      %s38 = sadd.s32 %s37, 1
      %s39 = scalar_select %p36, %s37, %s38
      %p42 = pneg %p36
      %p43 = scmp.eq.s32.totalorder %s13, 2
      %p44 = por %p42, %p43
      %p45 = scmp.ne.s32.totalorder %s37, %s40
      %p46 = scmp.eq.s32.totalorder %s13, 0
      %p47 = por %p45, %p46
      %p48 = scmp.ne.s32.totalorder %s37, %s40
      %p49 = scmp.eq.s32.totalorder %s18, 2
      %p50 = por %p48, %p49
      %p51 = scmp.ne.s32.totalorder %s40, %s41
      %p52 = scmp.eq.s32.totalorder %s18, 0
      %p53 = por %p51, %p52
      %p54 = scmp.ne.s32.totalorder %s40, %s41
      %p55 = scmp.eq.s32.totalorder %s19, 2
      %p56 = por %p54, %p55
      %p58 = scmp.ne.s32.totalorder %s41, %s57
      %p59 = scmp.eq.s32.totalorder %s19, 0
      %p60 = por %p58, %p59
      %s61 = ssub.s32 %s20, %s32
      %s62 = ssub.s32 %s21, %s28
      %s63 = sor.u32 %s61, %s62
      %p64 = scmp.eq.s32.totalorder %s63, 0
      %s66 = sadd.s32 %s65, 1
      %s67 = scalar_select %p64, %s65, %s66
      %p70 = pneg %p64
      %p71 = scmp.eq.s32.totalorder %s13, 2
      %p72 = por %p70, %p71
      %p73 = scmp.ne.s32.totalorder %s65, %s68
      %p74 = scmp.eq.s32.totalorder %s13, 0
      %p75 = por %p73, %p74
      %p76 = scmp.ne.s32.totalorder %s65, %s68
      %p77 = scmp.eq.s32.totalorder %s18, 2
      %p78 = por %p76, %p77
      %p79 = scmp.ne.s32.totalorder %s68, %s69
      %p80 = scmp.eq.s32.totalorder %s18, 0
      %p81 = por %p79, %p80
      %p82 = scmp.ne.s32.totalorder %s68, %s69
      %p83 = scmp.eq.s32.totalorder %s19, 2
      %p84 = por %p82, %p83
      %p86 = scmp.ne.s32.totalorder %s69, %s85
      %p87 = scmp.eq.s32.totalorder %s19, 0
      %p88 = por %p86, %p87
      %p89 = scmp.le.s32.totalorder 1, %s13
      %p90 = scmp.lt.s32.totalorder %s13, 4
      %p91 = pnand %p89, %p90
      %p92 = pneg %p91
      // Predicated region
      $region9: #{tpu_custom_call.1} parent=5 // pred_check
        _
      $region10: #{tpu_custom_call.1} parent=5 // pred_check_branch
        %94 = sbr.rel (%p91) target = $region12
      $region11: #{tpu_custom_call.1} parent=5 // pred_region
        %s95 = ssub.s32 %s13, 1
      $region12: #{tpu_custom_call.1} parent=5 // pred_fallthru
        _
      %p96 = scmp.lt.s32.totalorder %s13, 3
      // Predicated region
      $region13: #{tpu_custom_call.1} parent=5 // pred_check
        %p97 = pneg %p96
      $region14: #{tpu_custom_call.1} parent=5 // pred_check_branch
        %99 = sbr.rel (%p97) target = $region16
      $region15: #{tpu_custom_call.1} parent=5 // pred_region
        // Predicated region
        $region17: #{tpu_custom_call.1} parent=15 // pred_check
          %p100 = pneg %p47
        $region18: #{tpu_custom_call.1} parent=15 // pred_check_branch
          %102 = sbr.rel (%p100) target = $region20
        $region19: #{tpu_custom_call.1} parent=15 // pred_region
          %s103 = sand.u32 %s37, 1
          %s104 = scalar_lea.sflag [#allocation3], %s103
          %s105 = sand.u32 %s37, 1
          %s106 = smul.addr %s105, 256
          %s107 = scalar_lea.vmem [#allocation2], %s106
          %s108 = smul.u32 16, %s21
          %s110 = ssub.s32 4096, 4096
          %111 = vsyncadd %s104, %s110
          %s112 = smul.addr %s108, 2
          %s113 = smul.addr %s20, 96
          %s114 = sadd.s32 %s112, %s113
          %s115 = smul.addr %s114, 128
          %s116 = scalar_lea.hbm %s0, %s115
          %s117 = sshll.u32 %s107, 4
          %s118 = int_to_ptr.vmem [resolvable:$true] %s117
          %123 = dma.hbm_to_vmem [thread:$0]  %s116, 4096, %s118, %s104, 256, 256, 16
        $region20: #{tpu_custom_call.1} parent=15 // pred_fallthru
          _
      $region16: #{tpu_custom_call.1} parent=5 // pred_fallthru
        _
      %p124 = scmp.le.s32.totalorder 1, %s13
      %p125 = scmp.lt.s32.totalorder %s13, 4
      %p126 = pnand %p124, %p125
      %p127 = pneg %p126
      // Predicated region
      $region21: #{tpu_custom_call.1} parent=5 // pred_check
        _
      $region22: #{tpu_custom_call.1} parent=5 // pred_check_branch
        %129 = sbr.rel (%p126) target = $region24
      $region23: #{tpu_custom_call.1} parent=5 // pred_region
        %s130 = ssub.s32 %s13, 1
        %s131 = sand.u32 %s40, 1
        %s132 = scalar_lea.sflag [#allocation3], %s131
        %s133 = sand.u32 %s40, 1
        %s134 = smul.addr %s133, 256
        %s135 = scalar_lea.vmem [#allocation2], %s134
        // Predicated region
        $region25: #{tpu_custom_call.1} parent=23 // pred_check
          %p136 = pneg %p53
        $region26: #{tpu_custom_call.1} parent=23 // pred_check_branch
          %138 = sbr.rel (%p136) target = $region28
        $region27: #{tpu_custom_call.1} parent=23 // pred_region
          %139 = dma.done %s132, 4096
        $region28: #{tpu_custom_call.1} parent=23 // pred_fallthru
          _
        %s140 = sand.u32 %s40, 1
        %s141 = scalar_lea.sflag [#allocation3], %s140
        %s142 = sand.u32 %s40, 1
        %s143 = smul.addr %s142, 256
        %s144 = scalar_lea.vmem [#allocation2], %s143
        %p145 = pneg %p53
        %p146 = pneg %p50
        %p147 = pneg %p81
        %p148 = pneg %p78
        %s149 = sand.u32 %s68, 1
        %s150 = scalar_lea.sflag [#allocation4], %s149
        %s151 = sand.u32 %s68, 1
        %s152 = smul.addr %s151, 256
        %s153 = scalar_lea.vmem [#allocation5], %s152
        %s154 = smul.u32 16, %s23
        %s155 = smul.u32 16, %s23
        %v156 = vld [vmem:[%s135] sm:$0xff]
        %v157 = vld [vmem:[%s135 + $0x8] sm:$0xff]
        %v158 = vld [vmem:[%s135 + $0x10] sm:$0xff]
        %v159 = vld [vmem:[%s135 + $0x18] sm:$0xff]
        %v160 = vld [vmem:[%s135 + $0x20] sm:$0xff]
        %v161 = vld [vmem:[%s135 + $0x28] sm:$0xff]
        %v162 = vld [vmem:[%s135 + $0x30] sm:$0xff]
        %v163 = vld [vmem:[%s135 + $0x38] sm:$0xff]
        %v164 = vld [vmem:[%s135 + $0x40] sm:$0xff]
        %v165 = vld [vmem:[%s135 + $0x48] sm:$0xff]
        %v166 = vld [vmem:[%s135 + $0x50] sm:$0xff]
        %v167 = vld [vmem:[%s135 + $0x58] sm:$0xff]
        %v168 = vld [vmem:[%s135 + $0x60] sm:$0xff]
        %v169 = vld [vmem:[%s135 + $0x68] sm:$0xff]
        %v170 = vld [vmem:[%s135 + $0x70] sm:$0xff]
        %v171 = vld [vmem:[%s135 + $0x78] sm:$0xff]
        %v172 = vld [vmem:[%s135 + $0x80] sm:$0xff]
        %v173 = vld [vmem:[%s135 + $0x88] sm:$0xff]
        %v174 = vld [vmem:[%s135 + $0x90] sm:$0xff]
        %v175 = vld [vmem:[%s135 + $0x98] sm:$0xff]
        %v176 = vld [vmem:[%s135 + $0xa0] sm:$0xff]
        %v177 = vld [vmem:[%s135 + $0xa8] sm:$0xff]
        %v178 = vld [vmem:[%s135 + $0xb0] sm:$0xff]
        %v179 = vld [vmem:[%s135 + $0xb8] sm:$0xff]
        %v180 = vld [vmem:[%s135 + $0xc0] sm:$0xff]
        %v181 = vld [vmem:[%s135 + $0xc8] sm:$0xff]
        %v182 = vld [vmem:[%s135 + $0xd0] sm:$0xff]
        %v183 = vld [vmem:[%s135 + $0xd8] sm:$0xff]
        %v184 = vld [vmem:[%s135 + $0xe0] sm:$0xff]
        %v185 = vld [vmem:[%s135 + $0xe8] sm:$0xff]
        %v186 = vld [vmem:[%s135 + $0xf0] sm:$0xff]
        %v187 = vld [vmem:[%s135 + $0xf8] sm:$0xff]
        %188 = vst [vmem:[%s153] sm:$0xff] %v156
        %189 = vst [vmem:[%s153 + $0x8] sm:$0xff] %v157
        %190 = vst [vmem:[%s153 + $0x10] sm:$0xff] %v158
        %191 = vst [vmem:[%s153 + $0x18] sm:$0xff] %v159
        %192 = vst [vmem:[%s153 + $0x20] sm:$0xff] %v160
        %193 = vst [vmem:[%s153 + $0x28] sm:$0xff] %v161
        %194 = vst [vmem:[%s153 + $0x30] sm:$0xff] %v162
        %195 = vst [vmem:[%s153 + $0x38] sm:$0xff] %v163
        %196 = vst [vmem:[%s153 + $0x40] sm:$0xff] %v164
        %197 = vst [vmem:[%s153 + $0x48] sm:$0xff] %v165
        %198 = vst [vmem:[%s153 + $0x50] sm:$0xff] %v166
        %199 = vst [vmem:[%s153 + $0x58] sm:$0xff] %v167
        %200 = vst [vmem:[%s153 + $0x60] sm:$0xff] %v168
        %201 = vst [vmem:[%s153 + $0x68] sm:$0xff] %v169
        %202 = vst [vmem:[%s153 + $0x70] sm:$0xff] %v170
        %203 = vst [vmem:[%s153 + $0x78] sm:$0xff] %v171
        %204 = vst [vmem:[%s153 + $0x80] sm:$0xff] %v172
        %205 = vst [vmem:[%s153 + $0x88] sm:$0xff] %v173
        %206 = vst [vmem:[%s153 + $0x90] sm:$0xff] %v174
        %207 = vst [vmem:[%s153 + $0x98] sm:$0xff] %v175
        %208 = vst [vmem:[%s153 + $0xa0] sm:$0xff] %v176
        %209 = vst [vmem:[%s153 + $0xa8] sm:$0xff] %v177
        %210 = vst [vmem:[%s153 + $0xb0] sm:$0xff] %v178
        %211 = vst [vmem:[%s153 + $0xb8] sm:$0xff] %v179
        %212 = vst [vmem:[%s153 + $0xc0] sm:$0xff] %v180
        %213 = vst [vmem:[%s153 + $0xc8] sm:$0xff] %v181
        %214 = vst [vmem:[%s153 + $0xd0] sm:$0xff] %v182
        %215 = vst [vmem:[%s153 + $0xd8] sm:$0xff] %v183
        %216 = vst [vmem:[%s153 + $0xe0] sm:$0xff] %v184
        %217 = vst [vmem:[%s153 + $0xe8] sm:$0xff] %v185
        %218 = vst [vmem:[%s153 + $0xf0] sm:$0xff] %v186
        %219 = vst [vmem:[%s153 + $0xf8] sm:$0xff] %v187
        %s220 = sand.u32 %s68, 1
        %s221 = scalar_lea.sflag [#allocation4], %s220
        %s222 = sand.u32 %s68, 1
        %s223 = smul.addr %s222, 256
        %s224 = scalar_lea.vmem [#allocation5], %s223
        // Predicated region
        $region29: #{tpu_custom_call.1} parent=23 // pred_check
          %p225 = pneg %p78
        $region30: #{tpu_custom_call.1} parent=23 // pred_check_branch
          %227 = sbr.rel (%p225) target = $region32
        $region31: #{tpu_custom_call.1} parent=23 // pred_region
          %s228 = smul.u32 16, %s23
          %s230 = ssub.s32 4096, 4096
          %231 = vsyncadd %s221, %s230
          %s232 = smul.addr %s228, 2
          %s233 = smul.addr %s22, 96
          %s234 = sadd.s32 %s232, %s233
          %s235 = smul.addr %s234, 128
          %s236 = scalar_lea.hbm %s1, %s235
          %s237 = sshll.u32 %s224, 4
          %s238 = int_to_ptr.vmem [resolvable:$true] %s237
          %243 = dma.vmem_to_hbm [thread:$0]  %s238, 4096, %s236, %s221, 256, 256, 16
        $region32: #{tpu_custom_call.1} parent=23 // pred_fallthru
          _
      $region24: #{tpu_custom_call.1} parent=5 // pred_fallthru
        _
      %p244 = scmp.le.s32.totalorder 2, %s13
      // Predicated region
      $region33: #{tpu_custom_call.1} parent=5 // pred_check
        %p245 = pneg %p244
      $region34: #{tpu_custom_call.1} parent=5 // pred_check_branch
        %247 = sbr.rel (%p245) target = $region36
      $region35: #{tpu_custom_call.1} parent=5 // pred_region
        %s248 = ssub.s32 %s13, 2
        // Predicated region
        $region37: #{tpu_custom_call.1} parent=35 // pred_check
          %p249 = pneg %p84
        $region38: #{tpu_custom_call.1} parent=35 // pred_check_branch
          %251 = sbr.rel (%p249) target = $region40
        $region39: #{tpu_custom_call.1} parent=35 // pred_region
          %s252 = sand.u32 %s69, 1
          %s253 = scalar_lea.sflag [#allocation4], %s252
          %s254 = sand.u32 %s69, 1
          %s255 = smul.addr %s254, 256
          %s256 = scalar_lea.vmem [#allocation5], %s255
          %257 = dma.done %s253, 4096
        $region40: #{tpu_custom_call.1} parent=35 // pred_fallthru
          _
      $region36: #{tpu_custom_call.1} parent=5 // pred_fallthru
        _
    $region6: #{tpu_custom_call.1} parent=1 // loop_footer
      %s17 = sadd.s32 1, %s13
    $region7: #{tpu_custom_call.1} parent=1 // loop_footer_branch
      %12 = sbr.rel target = $region3
    $region8: #{tpu_custom_call.1} parent=1 // loop_exit
      _
    %258 = vsyncpa [#allocation3], 1
    %s259 = scalar_lea.sflag [#allocation3], 1
    %260 = vsyncpa %s259, 1
    %261 = vsyncpa [#allocation4], 1
    %s262 = scalar_lea.sflag [#allocation4], 1
    %263 = vsyncpa %s262, 1

</llo_original>
